<compile_context>
chip_gen: v5e
topology: v5e:2x2
jax: 0.10.0
libtpu: 0.0.40
codegen_flags: <defaults>
</compile_context>

<pallas_src>
import functools

import jax
import jax.numpy as jnp
from jax.experimental import pallas as pl
from jax.experimental.pallas import tpu as pltpu


def _round_up(x, m):
    return ((x + m - 1) // m) * m


def _cdiv(a, b):
    return -(-a // b)


def dqn_kernel(x_ref, w1_ref, b1_ref, w2_ref, b2_ref, w3_ref, b3_ref, o_ref):
    """relu(x@W1+b1) -> relu(@W2+b2) -> @W3+b3. bf16 MXU inputs, f32 accumulation."""
    x = x_ref[...].astype(jnp.bfloat16)  # cast in-kernel; no wrapper pad/cast round trip
    h1 = jnp.dot(x, w1_ref[...], preferred_element_type=jnp.float32) + b1_ref[...]
    h1 = jnp.maximum(h1, 0.0).astype(jnp.bfloat16)
    h2 = jnp.dot(h1, w2_ref[...], preferred_element_type=jnp.float32) + b2_ref[...]
    h2 = jnp.maximum(h2, 0.0).astype(jnp.bfloat16)
    out = jnp.dot(h2, w3_ref[...], preferred_element_type=jnp.float32) + b3_ref[...]
    o_ref[...] = out.astype(o_ref.dtype)  # narrow (TB, n_actions) store


def prepare_params(w1, b1, w2, b2, w3, b3):
    """Pad + cast parameters ONCE (outside the per-forward path).

    Weights are (in_features, out_features) so each layer is y = x @ W + b.
    Hidden lane dims (which feed later contractions) are padded to 128; the first
    contraction dim (D_in) and the final action dim stay unpadded. Biases stay f32.
    """
    D_in, H1 = w1.shape
    H2 = w2.shape[1]
    A = w3.shape[1]
    H1p = _round_up(H1, 128)
    H2p = _round_up(H2, 128)

    bf16, f32 = jnp.bfloat16, jnp.float32
    w1_p = jnp.zeros((D_in, H1p), bf16).at[:, :H1].set(w1.astype(bf16))
    b1_p = jnp.zeros((1, H1p), f32).at[0, :H1].set(b1.astype(f32))
    w2_p = jnp.zeros((H1p, H2p), bf16).at[:H1, :H2].set(w2.astype(bf16))
    b2_p = jnp.zeros((1, H2p), f32).at[0, :H2].set(b2.astype(f32))
    w3_p = jnp.zeros((H2p, A), bf16).at[:H2, :].set(w3.astype(bf16))
    b3_p = b3.astype(f32).reshape(1, A)
    return (w1_p, b1_p, w2_p, b2_p, w3_p, b3_p)


@functools.partial(jax.jit, static_argnames=("n_actions",))
def simple_dqn_forward(state, params, n_actions):
    """state: (B, input_dims) f32 (passed to the kernel untouched); params: prepare_params output."""
    w1_p, b1_p, w2_p, b2_p, w3_p, b3_p = params
    B, D_in = state.shape
    H1p = w1_p.shape[1]
    H2p = w2_p.shape[1]
    A = w3_p.shape[1]
    assert A == n_actions

    # Batch tile selection:
    #  * B < 32:   single exact tile (splitting would only add per-step overhead).
    #  * B <= 1024: exactly 2 tiles -> both v7x TensorCores get work (no-op on v5e/v6e).
    #  * B > 1024: TB = 512 (big tiles amortize the ~0.35 us per-grid-step overhead;
    #              double-buffered VMEM stays far under the scoped limit).
    TB_MAX = 512
    if B < 32:
        TB = B
    elif B <= 2 * TB_MAX:
        TB = _round_up(_cdiv(B, 2), 8)
    else:
        TB = TB_MAX
    grid = (_cdiv(B, TB),)

    return pl.pallas_call(
        dqn_kernel,
        out_shape=jax.ShapeDtypeStruct((B, A), jnp.float32),
        grid=grid,
        in_specs=[
            pl.BlockSpec((TB, D_in), lambda i: (i, 0)),    # raw f32 state tile (pipelined)
            pl.BlockSpec((D_in, H1p), lambda i: (0, 0)),   # weights/biases: fully resident
            pl.BlockSpec((1, H1p), lambda i: (0, 0)),
            pl.BlockSpec((H1p, H2p), lambda i: (0, 0)),
            pl.BlockSpec((1, H2p), lambda i: (0, 0)),
            pl.BlockSpec((H2p, A), lambda i: (0, 0)),
            pl.BlockSpec((1, A), lambda i: (0, 0)),
        ],
        out_specs=pl.BlockSpec((TB, A), lambda i: (i, 0)),  # exact (B, n_actions) output
        compiler_params=pltpu.CompilerParams(
            dimension_semantics=("parallel",),               # v7x: shard batch tiles over 2 TCs
        ),
    )(state, w1_p, b1_p, w2_p, b2_p, w3_p, b3_p)


def init_params(key, input_dims, fc1_dims, fc2_dims, n_actions):
    """Deterministic init mimicking nn.Linear's uniform(-1/sqrt(fan_in), +)."""
    ks = jax.random.split(key, 6)

    def lin(kw, kb, fan_in, fan_out):
        bound = 1.0 / jnp.sqrt(jnp.float32(fan_in))
        w = jax.random.uniform(kw, (fan_in, fan_out), jnp.float32, -bound, bound)
        b = jax.random.uniform(kb, (fan_out,), jnp.float32, -bound, bound)
        return w, b

    w1, b1 = lin(ks[0], ks[1], input_dims, fc1_dims)
    w2, b2 = lin(ks[2], ks[3], fc1_dims, fc2_dims)
    w3, b3 = lin(ks[4], ks[5], fc2_dims, n_actions)
    return w1, b1, w2, b2, w3, b3


def reference_forward(state, w1, b1, w2, b2, w3, b3):
    h1 = jax.nn.relu(state @ w1 + b1)
    h2 = jax.nn.relu(h1 @ w2 + b2)
    return h2 @ w3 + b3


# TODO(synk): Adam optimizer / MSELoss / device plumbing from the PyTorch module are
# host-side training utilities, not part of the forward pass, and are not kernelized.

if __name__ == "__main__":
    key = jax.random.PRNGKey(0)
    k_params, k_state = jax.random.split(key)

    # Module hyperparameters: state len 8 -> 4 actions (as in the docstring).
    input_dims, fc1_dims, fc2_dims, n_actions = 8, 32, 32, 4

    raw_params = init_params(k_params, input_dims, fc1_dims, fc2_dims, n_actions)
    params = prepare_params(*raw_params)          # padded/cast ONCE, outside forward
    jax.block_until_ready(params)

    def check(batch, seed):
        state = jax.random.normal(jax.random.PRNGKey(seed), (batch, input_dims), jnp.float32)
        actions = simple_dqn_forward(state, params, n_actions)
        jax.block_until_ready(actions)
        ref = reference_forward(state, *raw_params)
        assert actions.shape == (batch, n_actions), actions.shape
        assert jnp.allclose(actions, ref, atol=5e-2, rtol=5e-2), (
            f"B={batch}: max abs err {jnp.max(jnp.abs(actions - ref))}")

    check(2, 0)      # tiny batch: single exact tile, grid=(1,)
    check(300, 1)    # mid batch: 2 tiles (TB=152), partial second block
    check(2048, 2)   # large batch: TB=512, grid=(4,), parallel batch axis

    print("KERNEL_OK")
</pallas_src>

<mosaic_0001>
module attributes {stable_mosaic.version = 11 : i64} {
  func.func @dqn_kernel(%arg0: i32, %arg1: memref<2x8xf32, #tpu.memory_space<vmem>>, %arg2: memref<8x128xbf16, #tpu.memory_space<vmem>>, %arg3: memref<1x128xf32, #tpu.memory_space<vmem>>, %arg4: memref<128x128xbf16, #tpu.memory_space<vmem>>, %arg5: memref<1x128xf32, #tpu.memory_space<vmem>>, %arg6: memref<128x4xbf16, #tpu.memory_space<vmem>>, %arg7: memref<1x4xf32, #tpu.memory_space<vmem>>, %arg8: memref<2x4xf32, #tpu.memory_space<vmem>>) attributes {dimension_semantics = [#tpu.dimension_semantics<parallel>], iteration_bounds = array<i64: 1>, scalar_prefetch = 0 : i64, scratch_operands = 0 : i64, tpu.core_type = #tpu.core_type<tc>, window_params = [{transform_indices = @transform_0, window_bounds = array<i64: 2, 8>}, {pipeline_mode = #tpu.pipeline_mode<synchronous>, transform_indices = @transform_1, window_bounds = array<i64: 8, 128>}, {pipeline_mode = #tpu.pipeline_mode<synchronous>, transform_indices = @transform_2, window_bounds = array<i64: 1, 128>}, {pipeline_mode = #tpu.pipeline_mode<synchronous>, transform_indices = @transform_3, window_bounds = array<i64: 128, 128>}, {pipeline_mode = #tpu.pipeline_mode<synchronous>, transform_indices = @transform_4, window_bounds = array<i64: 1, 128>}, {pipeline_mode = #tpu.pipeline_mode<synchronous>, transform_indices = @transform_5, window_bounds = array<i64: 128, 4>}, {pipeline_mode = #tpu.pipeline_mode<synchronous>, transform_indices = @transform_6, window_bounds = array<i64: 1, 4>}, {transform_indices = @transform_7, window_bounds = array<i64: 2, 4>}]} {
    %c0 = arith.constant 0 : index
    %c0_0 = arith.constant 0 : index
    %0 = vector.load %arg1[%c0, %c0_0] : memref<2x8xf32, #tpu.memory_space<vmem>>, vector<2x8xf32>
    %1 = arith.truncf %0 : vector<2x8xf32> to vector<2x8xbf16>
    %c0_1 = arith.constant 0 : index
    %c0_2 = arith.constant 0 : index
    %2 = vector.load %arg2[%c0_1, %c0_2] : memref<8x128xbf16, #tpu.memory_space<vmem>>, vector<8x128xbf16>
    %cst = arith.constant dense<0.000000e+00> : vector<2x128xf32>
    %3 = tpu.matmul %1, %2, %cst {dimension_numbers = #tpu.dot_dimension_numbers<[1], [0], [0], [1], [0, 0, 1, 1], [], []>} : vector<2x8xbf16>, vector<8x128xbf16>, vector<2x128xf32> -> vector<2x128xf32>
    %c0_3 = arith.constant 0 : index
    %c0_4 = arith.constant 0 : index
    %4 = vector.load %arg3[%c0_3, %c0_4] : memref<1x128xf32, #tpu.memory_space<vmem>>, vector<1x128xf32>
    %5 = vector.broadcast %4 : vector<1x128xf32> to vector<2x128xf32>
    %6 = arith.addf %3, %5 : vector<2x128xf32>
    %cst_5 = arith.constant 0.000000e+00 : f32
    %7 = vector.broadcast %cst_5 : f32 to vector<2x128xf32>
    %8 = arith.maximumf %6, %7 : vector<2x128xf32>
    %9 = arith.truncf %8 : vector<2x128xf32> to vector<2x128xbf16>
    %c0_6 = arith.constant 0 : index
    %c0_7 = arith.constant 0 : index
    %10 = vector.load %arg4[%c0_6, %c0_7] : memref<128x128xbf16, #tpu.memory_space<vmem>>, vector<128x128xbf16>
    %cst_8 = arith.constant dense<0.000000e+00> : vector<2x128xf32>
    %11 = tpu.matmul %9, %10, %cst_8 {dimension_numbers = #tpu.dot_dimension_numbers<[1], [0], [0], [1], [0, 0, 1, 1], [], []>} : vector<2x128xbf16>, vector<128x128xbf16>, vector<2x128xf32> -> vector<2x128xf32>
    %c0_9 = arith.constant 0 : index
    %c0_10 = arith.constant 0 : index
    %12 = vector.load %arg5[%c0_9, %c0_10] : memref<1x128xf32, #tpu.memory_space<vmem>>, vector<1x128xf32>
    %13 = vector.broadcast %12 : vector<1x128xf32> to vector<2x128xf32>
    %14 = arith.addf %11, %13 : vector<2x128xf32>
    %cst_11 = arith.constant 0.000000e+00 : f32
    %15 = vector.broadcast %cst_11 : f32 to vector<2x128xf32>
    %16 = arith.maximumf %14, %15 : vector<2x128xf32>
    %17 = arith.truncf %16 : vector<2x128xf32> to vector<2x128xbf16>
    %c0_12 = arith.constant 0 : index
    %c0_13 = arith.constant 0 : index
    %18 = vector.load %arg6[%c0_12, %c0_13] : memref<128x4xbf16, #tpu.memory_space<vmem>>, vector<128x4xbf16>
    %cst_14 = arith.constant dense<0.000000e+00> : vector<2x4xf32>
    %19 = tpu.matmul %17, %18, %cst_14 {dimension_numbers = #tpu.dot_dimension_numbers<[1], [0], [0], [1], [0, 0, 1, 1], [], []>} : vector<2x128xbf16>, vector<128x4xbf16>, vector<2x4xf32> -> vector<2x4xf32>
    %c0_15 = arith.constant 0 : index
    %c0_16 = arith.constant 0 : index
    %20 = vector.load %arg7[%c0_15, %c0_16] : memref<1x4xf32, #tpu.memory_space<vmem>>, vector<1x4xf32>
    %21 = vector.broadcast %20 : vector<1x4xf32> to vector<2x4xf32>
    %22 = arith.addf %19, %21 : vector<2x4xf32>
    %c0_17 = arith.constant 0 : index
    %c0_18 = arith.constant 0 : index
    %23 = vector.load %arg8[%c0_17, %c0_18] : memref<2x4xf32, #tpu.memory_space<vmem>>, vector<2x4xf32>
    tpu.vector_store %arg8[%c0_17, %c0_18], %22 {strides = array<i32>} : memref<2x4xf32, #tpu.memory_space<vmem>>, vector<2x4xf32>,
    return
  }
  func.func @transform_0(%arg0: i32) -> (i32, i32) {
    %c0_i32 = arith.constant 0 : i32
    %c0_i32_0 = arith.constant 0 : i32
    return %arg0, %c0_i32 : i32, i32
  }
  func.func @transform_1(%arg0: i32) -> (i32, i32) {
    %c0_i32 = arith.constant 0 : i32
    %c0_i32_0 = arith.constant 0 : i32
    %c0_i32_1 = arith.constant 0 : i32
    return %c0_i32, %c0_i32_0 : i32, i32
  }
  func.func @transform_2(%arg0: i32) -> (i32, i32) {
    %c0_i32 = arith.constant 0 : i32
    %c0_i32_0 = arith.constant 0 : i32
    %c0_i32_1 = arith.constant 0 : i32
    return %c0_i32, %c0_i32_0 : i32, i32
  }
  func.func @transform_3(%arg0: i32) -> (i32, i32) {
    %c0_i32 = arith.constant 0 : i32
    %c0_i32_0 = arith.constant 0 : i32
    %c0_i32_1 = arith.constant 0 : i32
    return %c0_i32, %c0_i32_0 : i32, i32
  }
  func.func @transform_4(%arg0: i32) -> (i32, i32) {
    %c0_i32 = arith.constant 0 : i32
    %c0_i32_0 = arith.constant 0 : i32
    %c0_i32_1 = arith.constant 0 : i32
    return %c0_i32, %c0_i32_0 : i32, i32
  }
  func.func @transform_5(%arg0: i32) -> (i32, i32) {
    %c0_i32 = arith.constant 0 : i32
    %c0_i32_0 = arith.constant 0 : i32
    %c0_i32_1 = arith.constant 0 : i32
    return %c0_i32, %c0_i32_0 : i32, i32
  }
  func.func @transform_6(%arg0: i32) -> (i32, i32) {
    %c0_i32 = arith.constant 0 : i32
    %c0_i32_0 = arith.constant 0 : i32
    %c0_i32_1 = arith.constant 0 : i32
    return %c0_i32, %c0_i32_0 : i32, i32
  }
  func.func @transform_7(%arg0: i32) -> (i32, i32) {
    %c0_i32 = arith.constant 0 : i32
    %c0_i32_0 = arith.constant 0 : i32
    return %arg0, %c0_i32 : i32, i32
  }
}

</mosaic_0001>

<llo_original>
// kernel: simple_dqn_forward.1
$region0: #{simple_dqn_forward.1}
  #allocation0 [shape = 'u32[]', space=smem, size = 0x4, offset = 0x4, fixed_abs, tag = 'smem constant byte address 0x4 - core index']
  #allocation1 [shape = 'u32[72,128]{1,0:T(1,128)}', space=vmem, size = 0x9000, scoped, tag = 'internal scratch']
  %s0 = inlined_call_operand.vmem [shape: f32[2,8], index: 0, kind: input, shape index: {}]
  %s1 = inlined_call_operand.hbm [shape: bf16[8,128], index: 1, kind: input, shape index: {}]
  %s2 = inlined_call_operand.vmem [shape: f32[1,128], index: 2, kind: input, shape index: {}]
  %s3 = inlined_call_operand.vmem [shape: bf16[128,128], index: 3, kind: input, shape index: {}]
  %s4 = inlined_call_operand.hbm [shape: f32[1,128], index: 4, kind: input, shape index: {}]
  %s5 = inlined_call_operand.vmem [shape: bf16[128,4], index: 5, kind: input, shape index: {}]
  %s6 = inlined_call_operand.vmem [shape: f32[1,4], index: 6, kind: input, shape index: {}]
  %s7 = inlined_call_operand.hbm [shape: f32[2,4], index: 7, kind: output, shape index: {}]
  %s8 = sld [smem:[#allocation0]]
  $region46: #{simple_dqn_forward.1} parent=0
    _
  %s10 = ssub.s32 1, %s8
  %s11 = scalar_select 0, %s10, %s8
  $region1: #{simple_dqn_forward.1} parent=0
    #allocation2 [shape = 'u8[2048]{0}', space=vmem, size = 0x800, scoped, tag = 'input window, operand 1, single buffered']
    #allocation3 [shape = 's32[1]{0}', space=sflag, size = 0x4, scoped, tag = 'scoped memory for simple_dqn_forward.1']
    #allocation4 [shape = 's32[1]{0}', space=sflag, size = 0x4, scoped, tag = 'scoped memory for simple_dqn_forward.1']
    #allocation5 [shape = 'u8[512]{0}', space=vmem, size = 0x400, scoped, tag = 'input window, operand 4, single buffered']
    #allocation6 [shape = 's32[1]{0}', space=sflag, size = 0x4, scoped, tag = 'scoped memory for simple_dqn_forward.1']
    #allocation7 [shape = 'u8[1024]{0}', space=vmem, size = 0x400, scoped, tag = 'output window, operand 0, single buffered']
    %12 = vsyncpa [#allocation3], 0
    %13 = vsyncpa [#allocation6], 0
    %14 = vsyncpa [#allocation4], 0
    // Predicated region
    $region2: #{simple_dqn_forward.1} parent=1 // pred_check
      _
    $region3: #{simple_dqn_forward.1} parent=1 // pred_check_branch
      %16 = sbr.rel (0) target = $region5
    $region4: #{simple_dqn_forward.1} parent=1 // pred_region
      _
    $region5: #{simple_dqn_forward.1} parent=1 // pred_fallthru
      _
    // Predicated region
    $region6: #{simple_dqn_forward.1} parent=1 // pred_check
      _
    $region7: #{simple_dqn_forward.1} parent=1 // pred_check_branch
      %18 = sbr.rel (0) target = $region9
    $region8: #{simple_dqn_forward.1} parent=1 // pred_region
      %20 = vsyncadd [#allocation3], 0
      %s22 = sshll.u32 %s1, 4
      %s23 = int_to_ptr.hbm [resolvable:$true] %s22
      %s24 = sshll.u32 [#allocation2], 4
      %s25 = int_to_ptr.vmem [resolvable:$true] %s24
      %27 = dma.hbm_to_vmem [thread:$0]  %s23, 64, %s25, [#allocation3]
    $region9: #{simple_dqn_forward.1} parent=1 // pred_fallthru
      _
    // Predicated region
    $region10: #{simple_dqn_forward.1} parent=1 // pred_check
      _
    $region11: #{simple_dqn_forward.1} parent=1 // pred_check_branch
      %29 = sbr.rel (0) target = $region13
    $region12: #{simple_dqn_forward.1} parent=1 // pred_region
      _
    $region13: #{simple_dqn_forward.1} parent=1 // pred_fallthru
      _
    // Predicated region
    $region14: #{simple_dqn_forward.1} parent=1 // pred_check
      _
    $region15: #{simple_dqn_forward.1} parent=1 // pred_check_branch
      %31 = sbr.rel (0) target = $region17
    $region16: #{simple_dqn_forward.1} parent=1 // pred_region
      _
    $region17: #{simple_dqn_forward.1} parent=1 // pred_fallthru
      _
    // Predicated region
    $region18: #{simple_dqn_forward.1} parent=1 // pred_check
      _
    $region19: #{simple_dqn_forward.1} parent=1 // pred_check_branch
      %33 = sbr.rel (0) target = $region21
    $region20: #{simple_dqn_forward.1} parent=1 // pred_region
      %35 = vsyncadd [#allocation6], 0
      %s37 = sshll.u32 %s4, 4
      %s38 = int_to_ptr.hbm [resolvable:$true] %s37
      %s39 = sshll.u32 [#allocation5], 4
      %s40 = int_to_ptr.vmem [resolvable:$true] %s39
      %42 = dma.hbm_to_vmem [thread:$0]  %s38, 16, %s40, [#allocation6]
    $region21: #{simple_dqn_forward.1} parent=1 // pred_fallthru
      _
    // Predicated region
    $region22: #{simple_dqn_forward.1} parent=1 // pred_check
      _
    $region23: #{simple_dqn_forward.1} parent=1 // pred_check_branch
      %44 = sbr.rel (0) target = $region25
    $region24: #{simple_dqn_forward.1} parent=1 // pred_region
      _
    $region25: #{simple_dqn_forward.1} parent=1 // pred_fallthru
      _
    // Predicated region
    $region26: #{simple_dqn_forward.1} parent=1 // pred_check
      _
    $region27: #{simple_dqn_forward.1} parent=1 // pred_check_branch
      %46 = sbr.rel (0) target = $region29
    $region28: #{simple_dqn_forward.1} parent=1 // pred_region
      _
    $region29: #{simple_dqn_forward.1} parent=1 // pred_fallthru
      _
    // Predicated region
    $region30: #{simple_dqn_forward.1} parent=1 // pred_check
      _
    $region31: #{simple_dqn_forward.1} parent=1 // pred_check_branch
      %48 = sbr.rel (0) target = $region33
    $region32: #{simple_dqn_forward.1} parent=1 // pred_region
      %50 = dma.done [#allocation3], 64
    $region33: #{simple_dqn_forward.1} parent=1 // pred_fallthru
      _
    // Predicated region
    $region34: #{simple_dqn_forward.1} parent=1 // pred_check
      _
    $region35: #{simple_dqn_forward.1} parent=1 // pred_check_branch
      %52 = sbr.rel (0) target = $region37
    $region36: #{simple_dqn_forward.1} parent=1 // pred_region
      %54 = dma.done [#allocation6], 16
    $region37: #{simple_dqn_forward.1} parent=1 // pred_fallthru
      _
    %v56 = vld [vmem:[%s0] sm:$0x3]
    %v57 = vpack.c.bf16 %v56, %v56
    %v58 = vld [vmem:[#allocation2] sm:$0xf]
    %v59 = vld [vmem:[%s2] sm:$0x1]
    %v61 = vperm.slane %v59, 0
    %vm63 = vcmask 64512
    %v65 = vsel %vm63, %v57, 0
    %vm67 = vcmask 1043456
    %v69 = vsel %vm67, %v58, 0
    %71 = vmatpush.bf16.msra.mxu0 0
    %72 = vmatpush.bf16.msra.mxu0 0
    %73 = vmatpush.bf16.msra.mxu0 0
    %74 = vmatpush.bf16.msra.mxu0 0
    %75 = vmatpush.bf16.msra.mxu0 0
    %76 = vmatpush.bf16.msra.mxu0 0
    %77 = vmatpush.bf16.msra.mxu0 0
    %78 = vmatpush.bf16.msra.mxu0 %v69
    %79 = vmatmul.bf16.gmra.mxu0 %v65
    %v80 = vpop.f32.mrf.mxu0
    %v81 = vadd.f32 %v61, %v80
    %v82 = vpop.f32.mrf.mxu0
    %83 = vdwg.mxu0
    %v84 = vmax.f32 %v81, 0.0
    %v85 = vpack.c.bf16 %v84, %v84
    %v86 = vld [vmem:[%s3] sm:$0xf]
    %v87 = vld [vmem:[%s3 + $0x4] sm:$0xf]
    %v88 = vld [vmem:[%s3 + $0x8] sm:$0xf]
    %v89 = vld [vmem:[%s3 + $0xc] sm:$0xf]
    %v90 = vld [vmem:[%s3 + $0x10] sm:$0xf]
    %v91 = vld [vmem:[%s3 + $0x14] sm:$0xf]
    %v92 = vld [vmem:[%s3 + $0x18] sm:$0xf]
    %v93 = vld [vmem:[%s3 + $0x1c] sm:$0xf]
    %v94 = vld [vmem:[%s3 + $0x20] sm:$0xf]
    %v95 = vld [vmem:[%s3 + $0x24] sm:$0xf]
    %v96 = vld [vmem:[%s3 + $0x28] sm:$0xf]
    %v97 = vld [vmem:[%s3 + $0x2c] sm:$0xf]
    %v98 = vld [vmem:[%s3 + $0x30] sm:$0xf]
    %v99 = vld [vmem:[%s3 + $0x34] sm:$0xf]
    %v100 = vld [vmem:[%s3 + $0x38] sm:$0xf]
    %v101 = vld [vmem:[%s3 + $0x3c] sm:$0xf]
    %v102 = vld [vmem:[#allocation5] sm:$0x1]
    %v104 = vperm.slane %v102, 0
    %v122 = vunpack.c.l.b16 %v86
    %v123 = vunpack.c.l.b16 %v87
    %v124 = vunpack.c.l.b16 %v88
    %v125 = vunpack.c.l.b16 %v89
    %v126 = vunpack.c.l.b16 %v90
    %v127 = vunpack.c.l.b16 %v91
    %v128 = vunpack.c.l.b16 %v92
    %v129 = vunpack.c.l.b16 %v93
    %v130 = vunpack.c.l.b16 %v94
    %v131 = vunpack.c.l.b16 %v95
    %v132 = vunpack.c.l.b16 %v96
    %v133 = vunpack.c.l.b16 %v97
    %v134 = vunpack.c.l.b16 %v98
    %v135 = vunpack.c.l.b16 %v99
    %v136 = vunpack.c.l.b16 %v100
    %v137 = vunpack.c.l.b16 %v101
    %v138 = vpack.c.b16 %v123, %v122
    %v139 = vpack.c.b16 %v125, %v124
    %v140 = vpack.c.b16 %v127, %v126
    %v141 = vpack.c.b16 %v129, %v128
    %v142 = vpack.c.b16 %v131, %v130
    %v143 = vpack.c.b16 %v133, %v132
    %v144 = vpack.c.b16 %v135, %v134
    %v145 = vpack.c.b16 %v137, %v136
    %154 = vmatpush.bf16.msra.mxu0 %v145
    %155 = vmatpush.bf16.msra.mxu0 %v144
    %156 = vmatpush.bf16.msra.mxu0 %v143
    %157 = vmatpush.bf16.msra.mxu0 %v142
    %158 = vmatpush.bf16.msra.mxu0 %v141
    %159 = vmatpush.bf16.msra.mxu0 %v140
    %160 = vmatpush.bf16.msra.mxu0 %v139
    %161 = vmatpush.bf16.msra.mxu0 %v138
    %162 = vmatmul.bf16.gmra.mxu0 %v85
    %v163 = vpop.f32.mrf.mxu0
    %v164 = vadd.f32 %v104, %v163
    %v165 = vpop.f32.mrf.mxu0
    %166 = vdwg.mxu0
    %v167 = vmax.f32 %v164, 0.0
    %v168 = vpack.c.bf16 %v167, %v167
    %v169 = vld [vmem:[%s5] sm:$0xf]
    %v170 = vld [vmem:[%s5 + $0x4] sm:$0xf]
    %v171 = vld [vmem:[%s5 + $0x8] sm:$0xf]
    %v172 = vld [vmem:[%s5 + $0xc] sm:$0xf]
    %v173 = vld [vmem:[%s5 + $0x10] sm:$0xf]
    %v174 = vld [vmem:[%s5 + $0x14] sm:$0xf]
    %v175 = vld [vmem:[%s5 + $0x18] sm:$0xf]
    %v176 = vld [vmem:[%s5 + $0x1c] sm:$0xf]
    %v177 = vld [vmem:[%s5 + $0x20] sm:$0xf]
    %v178 = vld [vmem:[%s5 + $0x24] sm:$0xf]
    %v179 = vld [vmem:[%s5 + $0x28] sm:$0xf]
    %v180 = vld [vmem:[%s5 + $0x2c] sm:$0xf]
    %v181 = vld [vmem:[%s5 + $0x30] sm:$0xf]
    %v182 = vld [vmem:[%s5 + $0x34] sm:$0xf]
    %v183 = vld [vmem:[%s5 + $0x38] sm:$0xf]
    %v184 = vld [vmem:[%s5 + $0x3c] sm:$0xf]
    %v185 = vld [vmem:[%s6] sm:$0x1]
    %v187 = vperm.slane %v185, 0
    %v205 = vunpack.c.l.b16 %v169
    %v206 = vunpack.c.l.b16 %v170
    %v207 = vunpack.c.l.b16 %v171
    %v208 = vunpack.c.l.b16 %v172
    %v209 = vunpack.c.l.b16 %v173
    %v210 = vunpack.c.l.b16 %v174
    %v211 = vunpack.c.l.b16 %v175
    %v212 = vunpack.c.l.b16 %v176
    %v213 = vunpack.c.l.b16 %v177
    %v214 = vunpack.c.l.b16 %v178
    %v215 = vunpack.c.l.b16 %v179
    %v216 = vunpack.c.l.b16 %v180
    %v217 = vunpack.c.l.b16 %v181
    %v218 = vunpack.c.l.b16 %v182
    %v219 = vunpack.c.l.b16 %v183
    %v220 = vunpack.c.l.b16 %v184
    %v221 = vpack.c.b16 %v206, %v205
    %v222 = vpack.c.b16 %v208, %v207
    %v223 = vpack.c.b16 %v210, %v209
    %v224 = vpack.c.b16 %v212, %v211
    %v225 = vpack.c.b16 %v214, %v213
    %v226 = vpack.c.b16 %v216, %v215
    %v227 = vpack.c.b16 %v218, %v217
    %v228 = vpack.c.b16 %v220, %v219
    %237 = vmatpush.bf16.msra.mxu0 %v228
    %238 = vmatpush.bf16.msra.mxu0 %v227
    %239 = vmatpush.bf16.msra.mxu0 %v226
    %240 = vmatpush.bf16.msra.mxu0 %v225
    %241 = vmatpush.bf16.msra.mxu0 %v224
    %242 = vmatpush.bf16.msra.mxu0 %v223
    %243 = vmatpush.bf16.msra.mxu0 %v222
    %244 = vmatpush.bf16.msra.mxu0 %v221
    %245 = vmatmul.bf16.gmra.mxu0 %v168
    %v246 = vpop.f32.mrf.mxu0
    %v247 = vadd.f32 %v187, %v246
    %v248 = vpop.f32.mrf.mxu0
    %249 = vdwg.mxu0
    %vm250 = vcmask 25600
    %251 = vst.msk [vmem:[#allocation7] sm:$0x3] %vm250, %v247
    // Predicated region
    $region38: #{simple_dqn_forward.1} parent=1 // pred_check
      _
    $region39: #{simple_dqn_forward.1} parent=1 // pred_check_branch
      %253 = sbr.rel (0) target = $region41
    $region40: #{simple_dqn_forward.1} parent=1 // pred_region
      %255 = vsyncadd [#allocation4], 0
      %s257 = sshll.u32 [#allocation7], 4
      %s258 = int_to_ptr.vmem [resolvable:$true] %s257
      %s259 = sshll.u32 %s7, 4
      %s260 = int_to_ptr.hbm [resolvable:$true] %s259
      %262 = dma.vmem_to_hbm [thread:$0]  %s258, 32, %s260, [#allocation4]
    $region41: #{simple_dqn_forward.1} parent=1 // pred_fallthru
      _
    // Predicated region
    $region42: #{simple_dqn_forward.1} parent=1 // pred_check
      _
    $region43: #{simple_dqn_forward.1} parent=1 // pred_check_branch
      %264 = sbr.rel (0) target = $region45
    $region44: #{simple_dqn_forward.1} parent=1 // pred_region
      %266 = dma.done [#allocation4], 32
    $region45: #{simple_dqn_forward.1} parent=1 // pred_fallthru
      _
    %267 = vsyncpa [#allocation3], 1
    %268 = vsyncpa [#allocation6], 1
    %269 = vsyncpa [#allocation4], 1

</llo_original>
